<compile_context>
chip_gen: v7x
topology: tpu7x:2x2x1
jax: 0.10.0
libtpu: 0.0.40
codegen_flags: <defaults>
</compile_context>

<pallas_src>
import functools

import jax
import jax.numpy as jnp
from jax.experimental import pallas as pl
from jax.experimental.pallas import tpu as pltpu

GEM_P_INIT = 3.0   # nn.Parameter(torch.ones(1) * 3)
GEM_EPS = 1e-6     # GeM eps


def _gem_kernel(p_ref, x_ref, out_ref, acc_ref, *, inv_npoints, use_bf16):
    """Grid = (batch blocks, point-chunk blocks); the k axis is a reduction.

    p_ref   : SMEM (1,) f32      learnable GeM exponent.
    x_ref   : VMEM (TB, PK, C)   per-point features for this chunk.
    out_ref : VMEM (TB, C)       pooled GeM descriptors (written at last k).
    acc_ref : VMEM (TB, C) f32   running sum of clamp(x, eps)**p over points.
    """
    k = pl.program_id(1)

    @pl.when(k == 0)
    def _():
        acc_ref[...] = jnp.zeros_like(acc_ref)

    p = p_ref[0]                                    # scalar read from SMEM
    g = jnp.maximum(x_ref[...], GEM_EPS)            # x.F.clamp(min=eps), g > 0

    # pow(p) == exp(p * log(g)); on v6e/v7x the bf16 EUP roughly doubles the
    # throughput of this (binding) transcendental work.  Accumulate in f32.
    cdt = jnp.bfloat16 if use_bf16 else jnp.float32
    g = g.astype(cdt)
    y = jnp.exp(p.astype(cdt) * jnp.log(g)).astype(jnp.float32)
    acc_ref[...] += jnp.sum(y, axis=1)              # partial sum over PK points

    @pl.when(k == pl.num_programs(1) - 1)
    def _():
        mean = acc_ref[...] * inv_npoints           # MinkowskiGlobalAvgPooling
        inv_p = 1.0 / p                             # one scalar divide
        out_ref[...] = jnp.exp(jnp.log(mean) * inv_p)   # pow(1/p) on pooled tile


def _pick_blocks(batch_size, points, channels, itemsize):
    """Choose (TB clouds, PK points) per grid step.

    Input block budget ~4 MiB so that 2x input (double buffer) + 2x output +
    scratch stays well under v5e's 16 MiB default scoped VMEM and leaves
    plenty of headroom on v6e (32 MiB) / v7x (64 MiB physical).
    """
    block_budget = 4 * 1024 * 1024

    # TB: multiple-of-8 divisor of B keeps (TB, C) output stores sublane-dense
    # and gives >= 2 "parallel" batch steps (v7x megacore) once B >= 16.
    if batch_size % 8 == 0:
        tb = 8
    else:
        tb = batch_size  # full-extent block is legal; stores are tiny anyway.
        # TODO(synk): pad B to a multiple of 8 for fully dense output stores.

    # PK: second-to-last dim of the x block -> multiple of 8 or the full P.
    if points % 8 != 0:
        pk = points
    else:
        max_elems = block_budget // max(1, tb * channels * itemsize)
        max_pk = max(8, (max_elems // 8) * 8)
        pk = min(points, max_pk)
        while points % pk != 0:
            pk -= 8
            if pk <= 8:
                pk = 8
                break

    # Guarantee >= 2 grid steps overall so DMA of block i+1 overlaps compute
    # of block i (per-step overhead ~0.35 us is negligible).
    if batch_size // tb == 1 and pk == points and points % 16 == 0:
        pk = points // 2
    return tb, pk


def _bf16_pow_supported():
    """bf16 EUP (log/exp) exists on v6e / v7x; not on v5e and earlier."""
    try:
        kind = jax.devices()[0].device_kind.lower()
    except Exception:
        return False
    return ("v6" in kind) or ("v7" in kind) or ("7x" in kind)


@functools.partial(
    jax.jit, static_argnames=("batch_size", "points_per_cloud", "use_bf16_pow"))
def gem_forward(features, coords, p, *, batch_size, points_per_cloud,
                use_bf16_pow=False):
    """features: (N, C) == x.F;  coords: (N, 4) i32 == x.C (col 0 = batch idx);
    p: (1,) f32 learnable GeM exponent.  Returns (batch_size, C) f32
    descriptors, exactly like GeM.forward's `temp.F.pow(1./p)` for a regular,
    batch-sorted sparse batch.
    """
    # TODO(synk): ragged / unsorted sparse batches need a coords[:, 0]-driven
    # segment mean (or per-cloud valid-point masks); here the batch is regular.
    del coords
    B, P = batch_size, points_per_cloud
    N, C = features.shape
    assert N == B * P, (N, B, P)
    x = features.reshape(B, P, C)
    p_smem = p.reshape(1).astype(jnp.float32)

    tb, pk = _pick_blocks(B, P, C, features.dtype.itemsize)
    grid = (B // tb, P // pk)

    kernel = functools.partial(
        _gem_kernel, inv_npoints=float(1.0 / P), use_bf16=use_bf16_pow)

    grid_spec = pltpu.PrefetchScalarGridSpec(
        num_scalar_prefetch=0,
        grid=grid,
        in_specs=[
            pl.BlockSpec(memory_space=pltpu.MemorySpace.SMEM),      # p scalar
            pl.BlockSpec((tb, pk, C), lambda b, k: (b, k, 0)),      # features
        ],
        out_specs=pl.BlockSpec((tb, C), lambda b, k: (b, 0)),       # pooled out
        scratch_shapes=[pltpu.VMEM((tb, C), jnp.float32)],          # accumulator
    )

    return pl.pallas_call(
        kernel,
        out_shape=jax.ShapeDtypeStruct((B, C), jnp.float32),
        grid_spec=grid_spec,
        compiler_params=pltpu.CompilerParams(
            dimension_semantics=("parallel", "arbitrary")),
    )(p_smem, x)


if __name__ == "__main__":
    key = jax.random.PRNGKey(0)
    k_feat, k_coord = jax.random.split(key, 2)

    B = 2      # point clouds in the batch
    P = 64     # points per cloud (regular sparse batch)
    C = 256    # per-point feature channels (MinkLoc3D feature_size)
    N = B * P

    # x.F: per-point features; x.C: int voxel coords, column 0 is batch index.
    features = jax.random.normal(k_feat, (N, C), jnp.float32)
    xyz = jax.random.randint(k_coord, (N, 3), 0, 16, jnp.int32)
    batch_idx = jnp.repeat(jnp.arange(B, dtype=jnp.int32), P)[:, None]
    coords = jnp.concatenate([batch_idx, xyz], axis=1)

    p = jnp.full((1,), GEM_P_INIT, jnp.float32)   # nn.Parameter(torch.ones(1)*3)

    use_bf16 = _bf16_pow_supported()
    out = gem_forward(features, coords, p, batch_size=B, points_per_cloud=P,
                      use_bf16_pow=use_bf16)
    out = jax.block_until_ready(out)

    # Pure-JAX f32 reference for the same regular-batch GeM.
    ref = jnp.mean(
        jnp.maximum(features, GEM_EPS).reshape(B, P, C) ** p[0], axis=1
    ) ** (1.0 / p[0])

    rtol = 2e-2 if use_bf16 else 2e-3   # bf16 EUP path has ~bf16 rounding noise
    assert out.shape == (B, C), out.shape
    assert bool(jnp.all(jnp.isfinite(out)))
    assert bool(jnp.allclose(out, ref, rtol=rtol, atol=1e-4)), float(
        jnp.max(jnp.abs(out - ref)))
    print("KERNEL_OK")
</pallas_src>

<mosaic_0001>
module attributes {stable_mosaic.version = 11 : i64} {
  func.func @_gem_kernel(%arg0: i32, %arg1: i32, %arg2: memref<1xf32, #tpu.memory_space<smem>>, %arg3: memref<2x32x256xf32, #tpu.memory_space<vmem>>, %arg4: memref<2x256xf32, #tpu.memory_space<vmem>>, %arg5: memref<2x256xf32, #tpu.memory_space<vmem>>) attributes {dimension_semantics = [#tpu.dimension_semantics<parallel>, #tpu.dimension_semantics<arbitrary>], iteration_bounds = array<i64: 1, 2>, scalar_prefetch = 0 : i64, scratch_operands = 1 : i64, tpu.core_type = #tpu.core_type<tc>, window_params = [{transform_indices = @transform_0, window_bounds = array<i64: 1>}, {transform_indices = @transform_1, window_bounds = array<i64: 2, 32, 256>}, {transform_indices = @transform_2, window_bounds = array<i64: 2, 256>}]} {
    %c0_i32 = arith.constant 0 : i32
    %0 = arith.cmpi eq, %arg1, %c0_i32 : i32
    %1 = arith.extui %0 : i1 to i32
    %c0_i32_0 = arith.constant 0 : i32
    %2 = arith.cmpi ne, %1, %c0_i32_0 : i32
    scf.if %2 {
      %cst_10 = arith.constant 0.000000e+00 : f32
      %18 = vector.broadcast %cst_10 : f32 to vector<2x256xf32>
      %c0_11 = arith.constant 0 : index
      %c0_12 = arith.constant 0 : index
      %19 = vector.load %arg5[%c0_11, %c0_12] : memref<2x256xf32, #tpu.memory_space<vmem>>, vector<2x256xf32>
      tpu.vector_store %arg5[%c0_11, %c0_12], %18 {strides = array<i32>} : memref<2x256xf32, #tpu.memory_space<vmem>>, vector<2x256xf32>,
    } else {
    }
    %c0 = arith.constant 0 : index
    %3 = memref.load %arg2[%c0] : memref<1xf32, #tpu.memory_space<smem>>
    %c0_1 = arith.constant 0 : index
    %c0_2 = arith.constant 0 : index
    %c0_3 = arith.constant 0 : index
    %4 = vector.load %arg3[%c0_1, %c0_2, %c0_3] : memref<2x32x256xf32, #tpu.memory_space<vmem>>, vector<2x32x256xf32>
    %cst = arith.constant 9.99999997E-7 : f32
    %5 = vector.broadcast %cst : f32 to vector<2x32x256xf32>
    %6 = arith.maximumf %4, %5 : vector<2x32x256xf32>
    %7 = math.log %6 : vector<2x32x256xf32>
    %8 = vector.broadcast %3 : f32 to vector<2x32x256xf32>
    %9 = arith.mulf %8, %7 : vector<2x32x256xf32>
    %10 = math.exp %9 : vector<2x32x256xf32>
    %c0_4 = arith.constant 0 : index
    %c0_5 = arith.constant 0 : index
    %11 = vector.load %arg5[%c0_4, %c0_5] : memref<2x256xf32, #tpu.memory_space<vmem>>, vector<2x256xf32>
    %cst_6 = arith.constant dense<0.000000e+00> : vector<2x256xf32>
    %12 = vector.multi_reduction <add>, %10, %cst_6 [1] : vector<2x32x256xf32> to vector<2x256xf32>
    %13 = arith.addf %11, %12 : vector<2x256xf32>
    %c0_7 = arith.constant 0 : index
    %c0_8 = arith.constant 0 : index
    %14 = vector.load %arg5[%c0_7, %c0_8] : memref<2x256xf32, #tpu.memory_space<vmem>>, vector<2x256xf32>
    tpu.vector_store %arg5[%c0_7, %c0_8], %13 {strides = array<i32>} : memref<2x256xf32, #tpu.memory_space<vmem>>, vector<2x256xf32>,
    %c1_i32 = arith.constant 1 : i32
    %15 = arith.cmpi eq, %arg1, %c1_i32 : i32
    %16 = arith.extui %15 : i1 to i32
    %c0_i32_9 = arith.constant 0 : i32
    %17 = arith.cmpi ne, %16, %c0_i32_9 : i32
    scf.if %17 {
      %c0_10 = arith.constant 0 : index
      %c0_11 = arith.constant 0 : index
      %18 = vector.load %arg5[%c0_10, %c0_11] : memref<2x256xf32, #tpu.memory_space<vmem>>, vector<2x256xf32>
      %cst_12 = arith.constant 1.562500e-02 : f32
      %19 = vector.broadcast %cst_12 : f32 to vector<2x256xf32>
      %20 = arith.mulf %18, %19 : vector<2x256xf32>
      %cst_13 = arith.constant 1.000000e+00 : f32
      %21 = arith.divf %cst_13, %3 : f32
      %22 = math.log %20 : vector<2x256xf32>
      %23 = vector.broadcast %21 : f32 to vector<2x256xf32>
      %24 = arith.mulf %22, %23 : vector<2x256xf32>
      %25 = math.exp %24 : vector<2x256xf32>
      %c0_14 = arith.constant 0 : index
      %c0_15 = arith.constant 0 : index
      %26 = vector.load %arg4[%c0_14, %c0_15] : memref<2x256xf32, #tpu.memory_space<vmem>>, vector<2x256xf32>
      tpu.vector_store %arg4[%c0_14, %c0_15], %25 {strides = array<i32>} : memref<2x256xf32, #tpu.memory_space<vmem>>, vector<2x256xf32>,
    } else {
    }
    return
  }
  func.func @transform_0(%arg0: i32, %arg1: i32) -> i32 {
    %c0_i32 = arith.constant 0 : i32
    %c0_i32_0 = arith.constant 0 : i32
    return %c0_i32 : i32
  }
  func.func @transform_1(%arg0: i32, %arg1: i32) -> (i32, i32, i32) {
    %c0_i32 = arith.constant 0 : i32
    %c0_i32_0 = arith.constant 0 : i32
    return %arg0, %arg1, %c0_i32 : i32, i32, i32
  }
  func.func @transform_2(%arg0: i32, %arg1: i32) -> (i32, i32) {
    %c0_i32 = arith.constant 0 : i32
    %c0_i32_0 = arith.constant 0 : i32
    return %arg0, %c0_i32 : i32, i32
  }
}

</mosaic_0001>

<llo_original>
// kernel: gem_forward.1
$region0: #{gem_forward.1}
  #allocation0 [shape = 'u32[]', space=smem, size = 0x4, offset = 0x4, fixed_abs, tag = 'smem constant byte address 0x4 - core index']
  #allocation1 [shape = 'u32[144,128]{1,0:T(1,128)}', space=vmem, size = 0x12000, scoped, tag = 'internal scratch']
  #allocation2 [shape = 'f32[2,256]{1,0:T(2,128)}', space=vmem, size = 0x800, scoped, tag = 'scratch operand']
  #allocation3 [shape = 'f32[1]{0:T(128)S(6)}', space=smem, size = 0x200, scoped, tag = 'scoped memory for gem_forward.1']
  #allocation8 [shape = 's32[]', space=sflag, size = 0x4, offset = 0, fixed_abs, tag = 'sflag constant byte address 0x0 - dummy sync flag']
  %s0 = inlined_call_operand.<no memory space> [shape: f32[1], index: 0, kind: input, shape index: {}]
  %s1 = inlined_call_operand.hbm [shape: f32[2,64,256], index: 1, kind: input, shape index: {}]
  %s2 = inlined_call_operand.hbm [shape: f32[2,256], index: 2, kind: output, shape index: {}]
  %s3 = sld [smem:[#allocation0]]
  $region53: #{gem_forward.1} parent=0
    _
  %s5 = ssub.s32 1, %s3
  %s6 = scalar_select 0, %s5, %s3
  %7 = sst [smem:[#allocation3]] %s0
  $region1: #{gem_forward.1} parent=0
    #allocation4 [shape = 'u8[131072]{0}', space=vmem, size = 0x20000, scoped, tag = 'input window, operand 1']
    #allocation5 [shape = 's32[2]{0}', space=sflag, size = 0x8, scoped, tag = 'scoped memory for gem_forward.1']
    #allocation6 [shape = 's32[2]{0}', space=sflag, size = 0x8, scoped, tag = 'scoped memory for gem_forward.1']
    #allocation7 [shape = 'u8[2048]{0}', space=vmem, size = 0x800, scoped, tag = 'output window, operand 0, single buffered']
    %8 = vsyncpa [#allocation5], 0
    %s9 = scalar_lea.sflag [#allocation5], 1
    %10 = vsyncpa %s9, 0
    %11 = vsyncpa [#allocation6], 0
    loop: start=0, step=1, limit=4
    $region2: #{gem_forward.1} parent=1 // loop_pre_header
      _
    $region3: #{gem_forward.1} parent=1 // loop_header
      %s13 = sphi 0, %s17
      %p14 = scmp.ge.s32.totalorder %s13, 4
      %s20 = sphi 0, %s32
      %s21 = sphi 0, %s28
      %s22 = sphi 0, %s20
      %s23 = sphi 0, %s21
      %s24 = sphi 0, %s22
      %s25 = sphi 0, %s23
      %s33 = sphi 0, %s33
      %s35 = sphi 0, %s33
      %s36 = sphi 0, %s35
      %s50 = sphi 0, %s36
      %s58 = sphi 0, %s60
      %s61 = sphi 0, %s58
      %s62 = sphi 0, %s61
      %s78 = sphi 0, %s62
      %s84 = sphi 0, %s86
      %s87 = sphi 0, %s84
      %s88 = sphi 0, %s87
      %s104 = sphi 0, %s88
    $region4: #{gem_forward.1} parent=1 // loop_header_branch
      %16 = sbr.rel (%p14) target = $region8
    $region5: #{gem_forward.1} parent=1 // loop_body
      %s18 = ssub.s32 %s13, 1
      %s19 = ssub.s32 %s13, 2
      %s26 = sadd.s32 1, %s21
      %p27 = scmp.ge.s32.totalorder %s26, 2
      %s28 = scalar_select %p27, 0, %s26
      %s29 = sadd.s32 1, %s20
      %s30 = scalar_select %p27, %s29, %s20
      %p31 = scmp.ge.s32.totalorder %s30, 1
      %s32 = scalar_select %p31, 0, %s30
      %s34 = sadd.s32 %s33, 1
      %p37 = scmp.eq.s32.totalorder %s13, 1
      %p38 = scmp.ne.s32.totalorder %s33, %s35
      %p39 = scmp.eq.s32.totalorder %s13, 0
      %p40 = por %p38, %p39
      %p41 = scmp.ne.s32.totalorder %s33, %s35
      %p42 = scmp.eq.s32.totalorder %s18, 1
      %p43 = por %p41, %p42
      %p44 = scmp.ne.s32.totalorder %s35, %s36
      %p45 = scmp.eq.s32.totalorder %s18, 0
      %p46 = por %p44, %p45
      %p47 = scmp.ne.s32.totalorder %s35, %s36
      %p48 = scmp.eq.s32.totalorder %s19, 1
      %p49 = por %p47, %p48
      %p51 = scmp.ne.s32.totalorder %s36, %s50
      %p52 = scmp.eq.s32.totalorder %s19, 0
      %p53 = por %p51, %p52
      %s54 = ssub.s32 %s20, %s32
      %s55 = ssub.s32 %s21, %s28
      %s56 = sor.u32 %s54, %s55
      %p57 = scmp.eq.s32.totalorder %s56, 0
      %s59 = sadd.s32 %s58, 1
      %s60 = scalar_select %p57, %s58, %s59
      %p63 = pneg %p57
      %p64 = scmp.eq.s32.totalorder %s13, 1
      %p65 = por %p63, %p64
      %p66 = scmp.ne.s32.totalorder %s58, %s61
      %p67 = scmp.eq.s32.totalorder %s13, 0
      %p68 = por %p66, %p67
      %p69 = scmp.ne.s32.totalorder %s58, %s61
      %p70 = scmp.eq.s32.totalorder %s18, 1
      %p71 = por %p69, %p70
      %p72 = scmp.ne.s32.totalorder %s61, %s62
      %p73 = scmp.eq.s32.totalorder %s18, 0
      %p74 = por %p72, %p73
      %p75 = scmp.ne.s32.totalorder %s61, %s62
      %p76 = scmp.eq.s32.totalorder %s19, 1
      %p77 = por %p75, %p76
      %p79 = scmp.ne.s32.totalorder %s62, %s78
      %p80 = scmp.eq.s32.totalorder %s19, 0
      %p81 = por %p79, %p80
      %s82 = ssub.s32 %s20, %s32
      %p83 = scmp.eq.s32.totalorder %s82, 0
      %s85 = sadd.s32 %s84, 1
      %s86 = scalar_select %p83, %s84, %s85
      %p89 = pneg %p83
      %p90 = scmp.eq.s32.totalorder %s13, 1
      %p91 = por %p89, %p90
      %p92 = scmp.ne.s32.totalorder %s84, %s87
      %p93 = scmp.eq.s32.totalorder %s13, 0
      %p94 = por %p92, %p93
      %p95 = scmp.ne.s32.totalorder %s84, %s87
      %p96 = scmp.eq.s32.totalorder %s18, 1
      %p97 = por %p95, %p96
      %p98 = scmp.ne.s32.totalorder %s87, %s88
      %p99 = scmp.eq.s32.totalorder %s18, 0
      %p100 = por %p98, %p99
      %p101 = scmp.ne.s32.totalorder %s87, %s88
      %p102 = scmp.eq.s32.totalorder %s19, 1
      %p103 = por %p101, %p102
      %p105 = scmp.ne.s32.totalorder %s88, %s104
      %p106 = scmp.eq.s32.totalorder %s19, 0
      %p107 = por %p105, %p106
      %p108 = scmp.le.s32.totalorder 1, %s13
      %p109 = scmp.lt.s32.totalorder %s13, 3
      %p110 = pnand %p108, %p109
      %p111 = pneg %p110
      // Predicated region
      $region9: #{gem_forward.1} parent=5 // pred_check
        _
      $region10: #{gem_forward.1} parent=5 // pred_check_branch
        %113 = sbr.rel (%p110) target = $region12
      $region11: #{gem_forward.1} parent=5 // pred_region
        %s114 = ssub.s32 %s13, 1
        // Predicated region
        $region13: #{gem_forward.1} parent=11 // pred_check
          %p115 = pneg %p46
        $region14: #{gem_forward.1} parent=11 // pred_check_branch
          %117 = sbr.rel (%p115) target = $region16
        $region15: #{gem_forward.1} parent=11 // pred_region
          _
        $region16: #{gem_forward.1} parent=11 // pred_fallthru
          _
      $region12: #{gem_forward.1} parent=5 // pred_fallthru
        _
      %p118 = scmp.lt.s32.totalorder %s13, 2
      // Predicated region
      $region17: #{gem_forward.1} parent=5 // pred_check
        %p119 = pneg %p118
      $region18: #{gem_forward.1} parent=5 // pred_check_branch
        %121 = sbr.rel (%p119) target = $region20
      $region19: #{gem_forward.1} parent=5 // pred_region
        // Predicated region
        $region21: #{gem_forward.1} parent=19 // pred_check
          %p122 = pneg %p68
        $region22: #{gem_forward.1} parent=19 // pred_check_branch
          %124 = sbr.rel (%p122) target = $region24
        $region23: #{gem_forward.1} parent=19 // pred_region
          #allocation9 [shape = 'u32[6]{0}', space=smem, size = 0x18, scoped, tag = 'DMA stride descriptor']
          %s125 = sand.u32 %s58, 1
          %s126 = scalar_lea.sflag [#allocation5], %s125
          %s127 = sand.u32 %s58, 1
          %s128 = smul.addr %s127, 128
          %s129 = scalar_lea.vmem [#allocation4], %s128
          %s130 = smul.u32 2, %s20
          %s131 = smul.u32 4, %s21
          %s133 = ssub.s32 2048, 2048
          %134 = vsyncadd %s126, %s133
          %s135 = smul.addr %s131, 2
          %s136 = smul.addr %s130, 16
          %s137 = sadd.s32 %s135, %s136
          %s138 = smul.addr %s137, 128
          %s139 = scalar_lea.hbm %s1, %s138
          %s141 = sshll.u32 1, 14
          %s142 = sxor.u32 4294967295, %s141
          %s144 = sld [smem:[#allocation0]]
          %s145 = sadd.s32 2, %s144
          %s147 = sshll.u32 7, 26
          %s148 = sxor.u32 4294967295, %s147
          %s149 = sand.u32 0, %s148
          %s150 = sshll.u32 %s145, 26
          %s151 = sor.u32 %s149, %s150
          %s152 = sshll.u32 %s129, 4
          %s153 = int_to_ptr.vmem [resolvable:$true] %s152
          %159 = sst [smem:[#allocation9]] 2048
          %s160 = scalar_lea.smem [#allocation9], 1
          %161 = sst [smem:[%s160]] 1024
          %s162 = scalar_lea.smem [#allocation9], 2
          %163 = sst [smem:[%s162]] 4
          %s164 = scalar_lea.smem [#allocation9], 3
          %165 = sst [smem:[%s164]] 256
          %s166 = scalar_lea.smem [#allocation9], 4
          %167 = sst [smem:[%s166]] 256
          %s168 = scalar_lea.smem [#allocation9], 5
          %169 = sst [smem:[%s168]] 16
          %171 = dma.general %s139, 2048, %s153, %s126, [#allocation8], [#allocation9], %s151, 0
        $region24: #{gem_forward.1} parent=19 // pred_fallthru
          _
      $region20: #{gem_forward.1} parent=5 // pred_fallthru
        _
      %p172 = scmp.le.s32.totalorder 1, %s13
      %p173 = scmp.lt.s32.totalorder %s13, 3
      %p174 = pnand %p172, %p173
      %p175 = pneg %p174
      // Predicated region
      $region25: #{gem_forward.1} parent=5 // pred_check
        _
      $region26: #{gem_forward.1} parent=5 // pred_check_branch
        %177 = sbr.rel (%p174) target = $region28
      $region27: #{gem_forward.1} parent=5 // pred_region
        %s178 = ssub.s32 %s13, 1
        %s179 = sand.u32 %s61, 1
        %s180 = scalar_lea.sflag [#allocation5], %s179
        %s181 = sand.u32 %s61, 1
        %s182 = smul.addr %s181, 128
        %s183 = scalar_lea.vmem [#allocation4], %s182
        // Predicated region
        $region29: #{gem_forward.1} parent=27 // pred_check
          %p184 = pneg %p74
        $region30: #{gem_forward.1} parent=27 // pred_check_branch
          %186 = sbr.rel (%p184) target = $region32
        $region31: #{gem_forward.1} parent=27 // pred_region
          %187 = dma.done %s180, 2048
        $region32: #{gem_forward.1} parent=27 // pred_fallthru
          _
        %p188 = pneg %p46
        %p189 = pneg %p43
        %s190 = sand.u32 %s61, 1
        %s191 = scalar_lea.sflag [#allocation5], %s190
        %s192 = sand.u32 %s61, 1
        %s193 = smul.addr %s192, 128
        %s194 = scalar_lea.vmem [#allocation4], %s193
        %p195 = pneg %p74
        %p196 = pneg %p71
        %p197 = pneg %p100
        %p198 = pneg %p97
        %s199 = smul.u32 2, %s22
        %s200 = smul.u32 4, %s23
        %p201 = scmp.eq.s32.totalorder %s23, 0
        // Predicated region
        $region33: #{gem_forward.1} parent=27 // pred_check
          %p202 = pneg %p201
        $region34: #{gem_forward.1} parent=27 // pred_check_branch
          %204 = sbr.rel (%p202) target = $region36
        $region35: #{gem_forward.1} parent=27 // pred_region
          %205 = vst [vmem:[#allocation2] sm:$0xf] 0.0
        $region36: #{gem_forward.1} parent=27 // pred_fallthru
          _
        %s206 = sld [smem:[#allocation3]]
        %v207 = vld [vmem:[%s183] sm:$0xff]
        %v208 = vld [vmem:[%s183 + $0x8] sm:$0xff]
        %v209 = vld [vmem:[%s183 + $0x10] sm:$0xff]
        %v210 = vld [vmem:[%s183 + $0x18] sm:$0xff]
        %v211 = vld [vmem:[%s183 + $0x20] sm:$0xff]
        %v212 = vld [vmem:[%s183 + $0x28] sm:$0xff]
        %v213 = vld [vmem:[%s183 + $0x30] sm:$0xff]
        %v214 = vld [vmem:[%s183 + $0x38] sm:$0xff]
        %v215 = vld [vmem:[%s183 + $0x40] sm:$0xff]
        %v216 = vld [vmem:[%s183 + $0x48] sm:$0xff]
        %v217 = vld [vmem:[%s183 + $0x50] sm:$0xff]
        %v218 = vld [vmem:[%s183 + $0x58] sm:$0xff]
        %v219 = vld [vmem:[%s183 + $0x60] sm:$0xff]
        %v220 = vld [vmem:[%s183 + $0x68] sm:$0xff]
        %v221 = vld [vmem:[%s183 + $0x70] sm:$0xff]
        %v222 = vld [vmem:[%s183 + $0x78] sm:$0xff]
        %v223 = vmax.f32 %v207, 1e-06
        %v224 = vmax.f32 %v208, 1e-06
        %v225 = vmax.f32 %v209, 1e-06
        %v226 = vmax.f32 %v210, 1e-06
        %v227 = vmax.f32 %v211, 1e-06
        %v228 = vmax.f32 %v212, 1e-06
        %v229 = vmax.f32 %v213, 1e-06
        %v230 = vmax.f32 %v214, 1e-06
        %v231 = vmax.f32 %v215, 1e-06
        %v232 = vmax.f32 %v216, 1e-06
        %v233 = vmax.f32 %v217, 1e-06
        %v234 = vmax.f32 %v218, 1e-06
        %v235 = vmax.f32 %v219, 1e-06
        %v236 = vmax.f32 %v220, 1e-06
        %v237 = vmax.f32 %v221, 1e-06
        %v238 = vmax.f32 %v222, 1e-06
        %v239 = vlog2.pop %v223
        %v240 = vmul.f32 %v239, 0.6931472
        %v241 = vlog2.pop %v224
        %v242 = vmul.f32 %v241, 0.6931472
        %v243 = vlog2.pop %v225
        %v244 = vmul.f32 %v243, 0.6931472
        %v245 = vlog2.pop %v226
        %v246 = vmul.f32 %v245, 0.6931472
        %v247 = vlog2.pop %v227
        %v248 = vmul.f32 %v247, 0.6931472
        %v249 = vlog2.pop %v228
        %v250 = vmul.f32 %v249, 0.6931472
        %v251 = vlog2.pop %v229
        %v252 = vmul.f32 %v251, 0.6931472
        %v253 = vlog2.pop %v230
        %v254 = vmul.f32 %v253, 0.6931472
        %v255 = vlog2.pop %v231
        %v256 = vmul.f32 %v255, 0.6931472
        %v257 = vlog2.pop %v232
        %v258 = vmul.f32 %v257, 0.6931472
        %v259 = vlog2.pop %v233
        %v260 = vmul.f32 %v259, 0.6931472
        %v261 = vlog2.pop %v234
        %v262 = vmul.f32 %v261, 0.6931472
        %v263 = vlog2.pop %v235
        %v264 = vmul.f32 %v263, 0.6931472
        %v265 = vlog2.pop %v236
        %v266 = vmul.f32 %v265, 0.6931472
        %v267 = vlog2.pop %v237
        %v268 = vmul.f32 %v267, 0.6931472
        %v269 = vlog2.pop %v238
        %v270 = vmul.f32 %v269, 0.6931472
        %v271 = vstv %s206
        %v272 = vmul.f32 %v271, %v240
        %v273 = vmul.f32 %v271, %v242
        %v274 = vmul.f32 %v271, %v244
        %v275 = vmul.f32 %v271, %v246
        %v276 = vmul.f32 %v271, %v248
        %v277 = vmul.f32 %v271, %v250
        %v278 = vmul.f32 %v271, %v252
        %v279 = vmul.f32 %v271, %v254
        %v280 = vmul.f32 %v271, %v256
        %v281 = vmul.f32 %v271, %v258
        %v282 = vmul.f32 %v271, %v260
        %v283 = vmul.f32 %v271, %v262
        %v284 = vmul.f32 %v271, %v264
        %v285 = vmul.f32 %v271, %v266
        %v286 = vmul.f32 %v271, %v268
        %v287 = vmul.f32 %v271, %v270
        %v288 = vmul.f32 %v272, 1.442695
        %v289 = vpow.pop %v288
        %v290 = vmul.f32 %v273, 1.442695
        %v291 = vpow.pop %v290
        %v292 = vmul.f32 %v274, 1.442695
        %v293 = vpow.pop %v292
        %v294 = vmul.f32 %v275, 1.442695
        %v295 = vpow.pop %v294
        %v296 = vmul.f32 %v276, 1.442695
        %v297 = vpow.pop %v296
        %v298 = vmul.f32 %v277, 1.442695
        %v299 = vpow.pop %v298
        %v300 = vmul.f32 %v278, 1.442695
        %v301 = vpow.pop %v300
        %v302 = vmul.f32 %v279, 1.442695
        %v303 = vpow.pop %v302
        %v304 = vmul.f32 %v280, 1.442695
        %v305 = vpow.pop %v304
        %v306 = vmul.f32 %v281, 1.442695
        %v307 = vpow.pop %v306
        %v308 = vmul.f32 %v282, 1.442695
        %v309 = vpow.pop %v308
        %v310 = vmul.f32 %v283, 1.442695
        %v311 = vpow.pop %v310
        %v312 = vmul.f32 %v284, 1.442695
        %v313 = vpow.pop %v312
        %v314 = vmul.f32 %v285, 1.442695
        %v315 = vpow.pop %v314
        %v316 = vmul.f32 %v286, 1.442695
        %v317 = vpow.pop %v316
        %v318 = vmul.f32 %v287, 1.442695
        %v319 = vpow.pop %v318
        %v320 = vld [vmem:[#allocation2] sm:$0xf]
        %v321 = vadd.f32 %v289, %v293
        %v322 = vadd.f32 %v321, %v297
        %v323 = vadd.f32 %v322, %v301
        %v324 = vrot.slane %v323, 4
        %v325 = vadd.f32 %v323, %v324
        %v326 = vrot.slane %v325, 2
        %v327 = vadd.f32 %v325, %v326
        %v328 = vrot.slane %v327, 1
        %v329 = vadd.f32 %v327, %v328
        %v330 = vadd.f32 %v291, %v295
        %v331 = vadd.f32 %v330, %v299
        %v332 = vadd.f32 %v331, %v303
        %v333 = vrot.slane %v332, 4
        %v334 = vadd.f32 %v332, %v333
        %v335 = vrot.slane %v334, 2
        %v336 = vadd.f32 %v334, %v335
        %v337 = vrot.slane %v336, 1
        %v338 = vadd.f32 %v336, %v337
        %v339 = vadd.f32 %v305, %v309
        %v340 = vadd.f32 %v339, %v313
        %v341 = vadd.f32 %v340, %v317
        %v342 = vrot.slane %v341, 4
        %v343 = vadd.f32 %v341, %v342
        %v344 = vrot.slane %v343, 2
        %v345 = vadd.f32 %v343, %v344
        %v346 = vrot.slane %v345, 1
        %v347 = vadd.f32 %v345, %v346
        %v348 = vadd.f32 %v307, %v311
        %v349 = vadd.f32 %v348, %v315
        %v350 = vadd.f32 %v349, %v319
        %v351 = vrot.slane %v350, 4
        %v352 = vadd.f32 %v350, %v351
        %v353 = vrot.slane %v352, 2
        %v354 = vadd.f32 %v352, %v353
        %v355 = vrot.slane %v354, 1
        %v356 = vadd.f32 %v354, %v355
        %v361 = vcombine.low %v329, %v338
        %v363 = vunpack.c.l.s4 1983009808
        %v364 = vunpack.c.0.s8 %v363
        %v365 = vlaneseq
        %v366 = vshrl.u32 %v365, 7
        %v367 = vsub.s32 %v364, %v366
        %v368 = vrot.slane %v361, %v367
        %v369 = vcombine.low %v347, %v356
        %v371 = vunpack.c.l.s4 1983009808
        %v372 = vunpack.c.0.s8 %v371
        %v373 = vlaneseq
        %v374 = vshrl.u32 %v373, 7
        %v375 = vsub.s32 %v372, %v374
        %v376 = vrot.slane %v369, %v375
        %vm377 = vcmask 1044484
        %v378 = vsel %vm377, %v368, %v368
        %vm379 = vcmask 1046534
        %v380 = vsel %vm379, %v368, %v378
        %v381 = vrot.slane %v376, 7
        %vm382 = vcmask 1041409
        %v383 = vsel %vm382, %v381, %v380
        %vm384 = vcmask 1043459
        %v385 = vsel %vm384, %v381, %v383
        %vm386 = vcmask 1045509
        %v387 = vsel %vm386, %v381, %v385
        %vm388 = vcmask 1047559
        %v389 = vsel %vm388, %v381, %v387
        %v391 = vadd.f32 %v320, %v389
        %392 = vst [vmem:[#allocation2] sm:$0xf] %v391
        %p393 = scmp.eq.s32.totalorder %s23, 1
        // Predicated region
        $region37: #{gem_forward.1} parent=27 // pred_check
          %p394 = pneg %p393
        $region38: #{gem_forward.1} parent=27 // pred_check_branch
          %396 = sbr.rel (%p394) target = $region40
        $region39: #{gem_forward.1} parent=27 // pred_region
          %v397 = vld [vmem:[#allocation2] sm:$0xf]
          %v398 = vmul.f32 %v397, 0.015625
          %v399 = vstv %s206
          %v400 = vrcp.pop %v399
          %s401 = vtos %v400
          %v402 = vlog2.pop %v398
          %v403 = vmul.f32 %v402, 0.6931472
          %v404 = vstv %s401
          %v405 = vmul.f32 %v403, %v404
          %v406 = vmul.f32 %v405, 1.442695
          %v407 = vpow.pop %v406
          %408 = vst [vmem:[#allocation7] sm:$0xf] %v407
        $region40: #{gem_forward.1} parent=27 // pred_fallthru
          _
        // Predicated region
        $region41: #{gem_forward.1} parent=27 // pred_check
          %p409 = pneg %p97
        $region42: #{gem_forward.1} parent=27 // pred_check_branch
          %411 = sbr.rel (%p409) target = $region44
        $region43: #{gem_forward.1} parent=27 // pred_region
          %s413 = ssub.s32 64, 64
          %414 = vsyncadd [#allocation6], %s413
          %s415 = smul.addr %s22, 2
          %s416 = smul.addr %s415, 32
          %s417 = scalar_lea.hbm %s2, %s416
          %s419 = sshll.u32 [#allocation7], 4
          %s420 = int_to_ptr.vmem [resolvable:$true] %s419
          %422 = dma.vmem_to_hbm [thread:$0]  %s420, 64, %s417, [#allocation6]
        $region44: #{gem_forward.1} parent=27 // pred_fallthru
          _
        // Predicated region
        $region45: #{gem_forward.1} parent=27 // pred_check
          %p423 = pneg %p97
        $region46: #{gem_forward.1} parent=27 // pred_check_branch
          %425 = sbr.rel (%p423) target = $region48
        $region47: #{gem_forward.1} parent=27 // pred_region
          %426 = dma.done [#allocation6], 64
        $region48: #{gem_forward.1} parent=27 // pred_fallthru
          _
      $region28: #{gem_forward.1} parent=5 // pred_fallthru
        _
      %p427 = scmp.le.s32.totalorder 2, %s13
      // Predicated region
      $region49: #{gem_forward.1} parent=5 // pred_check
        %p428 = pneg %p427
      $region50: #{gem_forward.1} parent=5 // pred_check_branch
        %430 = sbr.rel (%p428) target = $region52
      $region51: #{gem_forward.1} parent=5 // pred_region
        %s431 = ssub.s32 %s13, 2
      $region52: #{gem_forward.1} parent=5 // pred_fallthru
        _
    $region6: #{gem_forward.1} parent=1 // loop_footer
      %s17 = sadd.s32 1, %s13
    $region7: #{gem_forward.1} parent=1 // loop_footer_branch
      %12 = sbr.rel target = $region3
    $region8: #{gem_forward.1} parent=1 // loop_exit
      _
    %432 = vsyncpa [#allocation5], 1
    %s433 = scalar_lea.sflag [#allocation5], 1
    %434 = vsyncpa %s433, 1
    %435 = vsyncpa [#allocation6], 1
    %s436 = scalar_lea.sflag [#allocation6], 1
    %437 = vsyncpa %s436, 1

</llo_original>
